<compile_context>
chip_gen: v7x
topology: tpu7x:2x2x1
jax: 0.10.0
libtpu: 0.0.40
codegen_flags: <defaults>
</compile_context>

<pallas_src>
import jax
import jax.numpy as jnp
from jax import lax
from jax.experimental import pallas as pl
from jax.experimental.pallas import tpu as pltpu

SUBLANE = 8


def _round_up(x, m):
    return (x + m - 1) // m * m


def _cdiv(a, b):
    return (a + b - 1) // b


# ----------------------------- Pallas kernel --------------------------------

def _make_kernel(n_cat):
    """Fused: embedding gather -> concat -> fc1/tanh -> fc2/relu -> fc3/softplus."""

    def kernel(x_num_ref, x_cat_ref, *refs):
        emb_refs = refs[:n_cat]
        w1_ref, b1_ref, w2_ref, b2_ref, w3_ref, b3_ref, out_ref = refs[n_cat:]

        x_num = x_num_ref[...]                              # [tb, Fn] f32
        tb = x_num.shape[0]

        feats = [x_num]
        if n_cat:
            xc = x_cat_ref[...]                             # [tb, n_cat] i32
            for i, tbl_ref in enumerate(emb_refs):
                tbl = tbl_ref[...]                          # [rows_i, d] f32 (VMEM-resident)
                rows = tbl.shape[0]
                idx = xc[:, i:i + 1]                        # [tb, 1]
                iota = lax.broadcasted_iota(jnp.int32, (tb, rows), 1)
                onehot = (idx == iota).astype(jnp.float32)  # [tb, rows_i]
                # Row gather as a tiny MXU matmul: onehot @ table.
                feats.append(jnp.dot(onehot, tbl,
                                     preferred_element_type=jnp.float32))
        x = jnp.concatenate(feats, axis=-1)                 # [tb, F] f32 (in-register)

        # fc1 + Tanh (f32 accumulate, f32 activation).
        h1 = jnp.dot(x, w1_ref[...], preferred_element_type=jnp.float32)
        h1 = jnp.tanh(h1 + b1_ref[...])

        # fc2 + ReLU.
        h2 = jnp.dot(h1, w2_ref[...], preferred_element_type=jnp.float32)
        h2 = jnp.maximum(h2 + b2_ref[...], 0.0)

        # fc3 + Softplus on the real 2-wide head only.
        z = jnp.dot(h2, w3_ref[...], preferred_element_type=jnp.float32)
        z = z + b3_ref[...]                                 # [tb, 2]
        out_ref[...] = jnp.logaddexp(z, 0.0).astype(out_ref.dtype)

    return kernel


# --------------------------------- wrapper -----------------------------------

def mlp_qr_forward(x_num, x_cat, params, *, tb_max=2048):
    """Full MLPQR forward.

    x_num:  [B, num_numeric] float32
    x_cat:  [B, n_cat] int32
    params: dict with 'emb' (list of tables), 'w1','b1','w2','b2','w3','b3'
            (linear weights stored [in_features, out_features]).
    Returns (q, r): columns 0 and 1 of the 2-wide head, each [B] float32.
    """
    n_cat = len(params["emb"])
    B = x_num.shape[0]
    O = params["w3"].shape[1]                               # == 2

    # ---- batch tiling (only dimension tiled; feature dims stay unpadded) ----
    Bp = _round_up(max(B, 1), SUBLANE)
    tb = min(tb_max, Bp)
    if Bp >= 2 * SUBLANE and _cdiv(Bp, tb) < 2:
        tb = _round_up(_cdiv(Bp, 2), SUBLANE)               # >=2 grid steps for v7x's 2 TCs
    Bp = _round_up(Bp, tb)
    grid = (Bp // tb,)

    x_num_p = jnp.pad(x_num.astype(jnp.float32), ((0, Bp - B), (0, 0)))
    if n_cat:
        x_cat_p = jnp.pad(x_cat.astype(jnp.int32), ((0, Bp - B), (0, 0)))
    else:
        x_cat_p = jnp.zeros((Bp, 1), jnp.int32)             # dummy (ignored)

    emb = [t.astype(jnp.float32) for t in params["emb"]]
    weights = [params[k].astype(jnp.float32)
               for k in ("w1", "b1", "w2", "b2", "w3", "b3")]

    batch_tiled = lambda c: pl.BlockSpec((tb, c), lambda i: (i, 0))   # tiled over batch
    resident = lambda a: pl.BlockSpec(a.shape, lambda i: (0, 0))      # VMEM-resident

    in_specs = ([batch_tiled(x_num_p.shape[1]), batch_tiled(x_cat_p.shape[1])]
                + [resident(t) for t in emb]
                + [resident(w) for w in weights])

    out = pl.pallas_call(
        _make_kernel(n_cat),
        out_shape=jax.ShapeDtypeStruct((Bp, O), jnp.float32),
        grid=grid,
        in_specs=in_specs,
        out_specs=batch_tiled(O),
        compiler_params=pltpu.CompilerParams(
            dimension_semantics=("parallel",)),             # megacore sharding on v7x
    )(x_num_p, x_cat_p, *emb, *weights)

    return out[:B, 0], out[:B, 1]


# ------------------------- deterministic param init -------------------------

def init_params(key, num_numeric, max_embedding, dim_embedding,
                hidden_size1, hidden_size2):
    n_cat = len(max_embedding)
    input_size = num_numeric + n_cat * dim_embedding

    keys = jax.random.split(key, 6 + n_cat)

    def linear(kw, kb, fan_in, fan_out):
        # PyTorch-style uniform(-1/sqrt(fan_in), 1/sqrt(fan_in)); stored [in, out].
        bound = 1.0 / jnp.sqrt(jnp.float32(fan_in))
        w = jax.random.uniform(kw, (fan_in, fan_out), jnp.float32, -bound, bound)
        b = jax.random.uniform(kb, (1, fan_out), jnp.float32, -bound, bound)
        return w, b

    w1, b1 = linear(keys[0], keys[1], input_size, hidden_size1)
    w2, b2 = linear(keys[2], keys[3], hidden_size1, hidden_size2)
    w3, b3 = linear(keys[4], keys[5], hidden_size2, 2)

    emb = [
        jax.random.normal(keys[6 + i], (m + 1, dim_embedding), jnp.float32)
        for i, m in enumerate(max_embedding)
    ]
    return {"w1": w1, "b1": b1, "w2": w2, "b2": b2, "w3": w3, "b3": b3,
            "emb": emb}


# ----------------------------- pure-JAX reference ----------------------------

def ref_forward(x_num, x_cat, params):
    cat_feats = [tbl[x_cat[:, i]] for i, tbl in enumerate(params["emb"])]
    x = jnp.concatenate([x_num] + cat_feats, axis=-1).astype(jnp.float32)
    mm = lambda a, w: jnp.dot(a, w, precision=jax.lax.Precision.HIGHEST)
    h = jnp.tanh(mm(x, params["w1"]) + params["b1"])
    h = jnp.maximum(mm(h, params["w2"]) + params["b2"], 0.0)
    z = jnp.logaddexp(mm(h, params["w3"]) + params["b3"], 0.0)
    return z[:, 0], z[:, 1]


# ----------------------------------- main ------------------------------------

if __name__ == "__main__":
    # Small config consistent with the module's constructor.
    num_numeric = 6
    max_embedding = [5, 7, 3]        # 3 categorical features
    dim_embedding = 4
    hidden_size1 = 32
    hidden_size2 = 16
    batch = 8
    # config.input_size == num_numeric + n_cat * dim_embedding == 18

    key = jax.random.PRNGKey(0)
    k_param, k_num, k_cat = jax.random.split(key, 3)

    params = init_params(k_param, num_numeric, max_embedding, dim_embedding,
                         hidden_size1, hidden_size2)

    x_num = jax.random.normal(k_num, (batch, num_numeric), jnp.float32)
    cat_keys = jax.random.split(k_cat, len(max_embedding))
    x_cat = jnp.stack(
        [jax.random.randint(cat_keys[i], (batch,), 0, m + 1)
         for i, m in enumerate(max_embedding)], axis=1).astype(jnp.int32)

    q, r = jax.jit(mlp_qr_forward)(x_num, x_cat, params)
    q = jax.block_until_ready(q)
    r = jax.block_until_ready(r)
    assert q.shape == (batch,) and r.shape == (batch,)

    # Check against the f32 reference (kernel is all-f32; only MXU f32-pass
    # rounding differences vs. the XLA dot are expected).
    q_ref, r_ref = ref_forward(x_num, x_cat, params)
    assert jnp.allclose(q, q_ref, atol=2e-2, rtol=2e-2), (q, q_ref)
    assert jnp.allclose(r, r_ref, atol=2e-2, rtol=2e-2), (r, r_ref)

    print("KERNEL_OK")
</pallas_src>

<mosaic_0001>
module attributes {stable_mosaic.version = 11 : i64} {
  func.func @kernel(%arg0: i32, %arg1: memref<8x6xf32, #tpu.memory_space<vmem>>, %arg2: memref<8x3xi32, #tpu.memory_space<vmem>>, %arg3: memref<6x4xf32, #tpu.memory_space<vmem>>, %arg4: memref<8x4xf32, #tpu.memory_space<vmem>>, %arg5: memref<4x4xf32, #tpu.memory_space<vmem>>, %arg6: memref<18x32xf32, #tpu.memory_space<vmem>>, %arg7: memref<1x32xf32, #tpu.memory_space<vmem>>, %arg8: memref<32x16xf32, #tpu.memory_space<vmem>>, %arg9: memref<1x16xf32, #tpu.memory_space<vmem>>, %arg10: memref<16x2xf32, #tpu.memory_space<vmem>>, %arg11: memref<1x2xf32, #tpu.memory_space<vmem>>, %arg12: memref<8x2xf32, #tpu.memory_space<vmem>>) attributes {dimension_semantics = [#tpu.dimension_semantics<parallel>], iteration_bounds = array<i64: 1>, scalar_prefetch = 0 : i64, scratch_operands = 0 : i64, tpu.core_type = #tpu.core_type<tc>, window_params = [{transform_indices = @transform_0, window_bounds = array<i64: 8, 6>}, {transform_indices = @transform_1, window_bounds = array<i64: 8, 3>}, {pipeline_mode = #tpu.pipeline_mode<synchronous>, transform_indices = @transform_2, window_bounds = array<i64: 6, 4>}, {pipeline_mode = #tpu.pipeline_mode<synchronous>, transform_indices = @transform_3, window_bounds = array<i64: 8, 4>}, {pipeline_mode = #tpu.pipeline_mode<synchronous>, transform_indices = @transform_4, window_bounds = array<i64: 4, 4>}, {pipeline_mode = #tpu.pipeline_mode<synchronous>, transform_indices = @transform_5, window_bounds = array<i64: 18, 32>}, {pipeline_mode = #tpu.pipeline_mode<synchronous>, transform_indices = @transform_6, window_bounds = array<i64: 1, 32>}, {pipeline_mode = #tpu.pipeline_mode<synchronous>, transform_indices = @transform_7, window_bounds = array<i64: 32, 16>}, {pipeline_mode = #tpu.pipeline_mode<synchronous>, transform_indices = @transform_8, window_bounds = array<i64: 1, 16>}, {pipeline_mode = #tpu.pipeline_mode<synchronous>, transform_indices = @transform_9, window_bounds = array<i64: 16, 2>}, {pipeline_mode = #tpu.pipeline_mode<synchronous>, transform_indices = @transform_10, window_bounds = array<i64: 1, 2>}, {transform_indices = @transform_11, window_bounds = array<i64: 8, 2>}]} {
    %c0 = arith.constant 0 : index
    %c0_0 = arith.constant 0 : index
    %0 = vector.load %arg1[%c0, %c0_0] : memref<8x6xf32, #tpu.memory_space<vmem>>, vector<8x6xf32>
    %c0_1 = arith.constant 0 : index
    %c0_2 = arith.constant 0 : index
    %1 = vector.load %arg2[%c0_1, %c0_2] : memref<8x3xi32, #tpu.memory_space<vmem>>, vector<8x3xi32>
    %c0_3 = arith.constant 0 : index
    %c0_4 = arith.constant 0 : index
    %2 = vector.load %arg3[%c0_3, %c0_4] : memref<6x4xf32, #tpu.memory_space<vmem>>, vector<6x4xf32>
    %3 = vector.extract_strided_slice %1 {offsets = [0, 0], sizes = [8, 1], strides = [1, 1]} : vector<8x3xi32> to vector<8x1xi32>
    %4 = tpu.iota {dimensions = array<i32: 1>} : vector<8x6xi32>
    %5 = vector.broadcast %3 : vector<8x1xi32> to vector<8x6xi32>
    %6 = arith.cmpi eq, %5, %4 : vector<8x6xi32>
    %7 = arith.extui %6 : vector<8x6xi1> to vector<8x6xi32>
    %8 = arith.sitofp %7 : vector<8x6xi32> to vector<8x6xf32>
    %cst = arith.constant dense<0.000000e+00> : vector<8x4xf32>
    %9 = tpu.matmul %8, %2, %cst {dimension_numbers = #tpu.dot_dimension_numbers<[1], [0], [0], [1], [0, 0, 1, 1], [], []>} : vector<8x6xf32>, vector<6x4xf32>, vector<8x4xf32> -> vector<8x4xf32>
    %c0_5 = arith.constant 0 : index
    %c0_6 = arith.constant 0 : index
    %10 = vector.load %arg4[%c0_5, %c0_6] : memref<8x4xf32, #tpu.memory_space<vmem>>, vector<8x4xf32>
    %11 = vector.extract_strided_slice %1 {offsets = [0, 1], sizes = [8, 1], strides = [1, 1]} : vector<8x3xi32> to vector<8x1xi32>
    %12 = tpu.iota {dimensions = array<i32: 1>} : vector<8x8xi32>
    %13 = vector.broadcast %11 : vector<8x1xi32> to vector<8x8xi32>
    %14 = arith.cmpi eq, %13, %12 : vector<8x8xi32>
    %15 = arith.extui %14 : vector<8x8xi1> to vector<8x8xi32>
    %16 = arith.sitofp %15 : vector<8x8xi32> to vector<8x8xf32>
    %cst_7 = arith.constant dense<0.000000e+00> : vector<8x4xf32>
    %17 = tpu.matmul %16, %10, %cst_7 {dimension_numbers = #tpu.dot_dimension_numbers<[1], [0], [0], [1], [0, 0, 1, 1], [], []>} : vector<8x8xf32>, vector<8x4xf32>, vector<8x4xf32> -> vector<8x4xf32>
    %c0_8 = arith.constant 0 : index
    %c0_9 = arith.constant 0 : index
    %18 = vector.load %arg5[%c0_8, %c0_9] : memref<4x4xf32, #tpu.memory_space<vmem>>, vector<4x4xf32>
    %19 = vector.extract_strided_slice %1 {offsets = [0, 2], sizes = [8, 1], strides = [1, 1]} : vector<8x3xi32> to vector<8x1xi32>
    %20 = tpu.iota {dimensions = array<i32: 1>} : vector<8x4xi32>
    %21 = vector.broadcast %19 : vector<8x1xi32> to vector<8x4xi32>
    %22 = arith.cmpi eq, %21, %20 : vector<8x4xi32>
    %23 = arith.extui %22 : vector<8x4xi1> to vector<8x4xi32>
    %24 = arith.sitofp %23 : vector<8x4xi32> to vector<8x4xf32>
    %cst_10 = arith.constant dense<0.000000e+00> : vector<8x4xf32>
    %25 = tpu.matmul %24, %18, %cst_10 {dimension_numbers = #tpu.dot_dimension_numbers<[1], [0], [0], [1], [0, 0, 1, 1], [], []>} : vector<8x4xf32>, vector<4x4xf32>, vector<8x4xf32> -> vector<8x4xf32>
    %26 = tpu.concatenate %0, %9, %17, %25 in 1 : vector<8x6xf32>, vector<8x4xf32>, vector<8x4xf32>, vector<8x4xf32> -> vector<8x18xf32>
    %c0_11 = arith.constant 0 : index
    %c0_12 = arith.constant 0 : index
    %27 = vector.load %arg6[%c0_11, %c0_12] : memref<18x32xf32, #tpu.memory_space<vmem>>, vector<18x32xf32>
    %cst_13 = arith.constant dense<0.000000e+00> : vector<8x32xf32>
    %28 = tpu.matmul %26, %27, %cst_13 {dimension_numbers = #tpu.dot_dimension_numbers<[1], [0], [0], [1], [0, 0, 1, 1], [], []>} : vector<8x18xf32>, vector<18x32xf32>, vector<8x32xf32> -> vector<8x32xf32>
    %c0_14 = arith.constant 0 : index
    %c0_15 = arith.constant 0 : index
    %29 = vector.load %arg7[%c0_14, %c0_15] : memref<1x32xf32, #tpu.memory_space<vmem>>, vector<1x32xf32>
    %30 = vector.broadcast %29 : vector<1x32xf32> to vector<8x32xf32>
    %31 = arith.addf %28, %30 : vector<8x32xf32>
    %32 = math.tanh %31 : vector<8x32xf32>
    %c0_16 = arith.constant 0 : index
    %c0_17 = arith.constant 0 : index
    %33 = vector.load %arg8[%c0_16, %c0_17] : memref<32x16xf32, #tpu.memory_space<vmem>>, vector<32x16xf32>
    %cst_18 = arith.constant dense<0.000000e+00> : vector<8x16xf32>
    %34 = tpu.matmul %32, %33, %cst_18 {dimension_numbers = #tpu.dot_dimension_numbers<[1], [0], [0], [1], [0, 0, 1, 1], [], []>} : vector<8x32xf32>, vector<32x16xf32>, vector<8x16xf32> -> vector<8x16xf32>
    %c0_19 = arith.constant 0 : index
    %c0_20 = arith.constant 0 : index
    %35 = vector.load %arg9[%c0_19, %c0_20] : memref<1x16xf32, #tpu.memory_space<vmem>>, vector<1x16xf32>
    %36 = vector.broadcast %35 : vector<1x16xf32> to vector<8x16xf32>
    %37 = arith.addf %34, %36 : vector<8x16xf32>
    %cst_21 = arith.constant 0.000000e+00 : f32
    %38 = vector.broadcast %cst_21 : f32 to vector<8x16xf32>
    %39 = arith.maximumf %37, %38 : vector<8x16xf32>
    %c0_22 = arith.constant 0 : index
    %c0_23 = arith.constant 0 : index
    %40 = vector.load %arg10[%c0_22, %c0_23] : memref<16x2xf32, #tpu.memory_space<vmem>>, vector<16x2xf32>
    %cst_24 = arith.constant dense<0.000000e+00> : vector<8x2xf32>
    %41 = tpu.matmul %39, %40, %cst_24 {dimension_numbers = #tpu.dot_dimension_numbers<[1], [0], [0], [1], [0, 0, 1, 1], [], []>} : vector<8x16xf32>, vector<16x2xf32>, vector<8x2xf32> -> vector<8x2xf32>
    %c0_25 = arith.constant 0 : index
    %c0_26 = arith.constant 0 : index
    %42 = vector.load %arg11[%c0_25, %c0_26] : memref<1x2xf32, #tpu.memory_space<vmem>>, vector<1x2xf32>
    %43 = vector.broadcast %42 : vector<1x2xf32> to vector<8x2xf32>
    %44 = arith.addf %41, %43 : vector<8x2xf32>
    %cst_27 = arith.constant 0.000000e+00 : f32
    %45 = vector.broadcast %cst_27 : f32 to vector<8x2xf32>
    %46 = arith.maximumf %44, %45 : vector<8x2xf32>
    %47 = vector.broadcast %cst_27 : f32 to vector<8x2xf32>
    %48 = arith.subf %44, %47 : vector<8x2xf32>
    %49 = arith.cmpf one, %48, %48 : vector<8x2xf32>
    %50 = vector.broadcast %cst_27 : f32 to vector<8x2xf32>
    %51 = arith.addf %44, %50 : vector<8x2xf32>
    %52 = math.absf %48 : vector<8x2xf32>
    %cst_28 = arith.constant 0.000000e+00 : f32
    %53 = vector.broadcast %cst_28 : f32 to vector<8x2xf32>
    %54 = arith.subf %53, %52 : vector<8x2xf32>
    %55 = math.exp %54 : vector<8x2xf32>
    %56 = math.log1p %55 : vector<8x2xf32>
    %57 = arith.addf %46, %56 : vector<8x2xf32>
    %58 = arith.select %49, %51, %57 : vector<8x2xi1>, vector<8x2xf32>
    %c0_29 = arith.constant 0 : index
    %c0_30 = arith.constant 0 : index
    %59 = vector.load %arg12[%c0_29, %c0_30] : memref<8x2xf32, #tpu.memory_space<vmem>>, vector<8x2xf32>
    tpu.vector_store %arg12[%c0_29, %c0_30], %58 {strides = array<i32>} : memref<8x2xf32, #tpu.memory_space<vmem>>, vector<8x2xf32>,
    return
  }
  func.func @transform_0(%arg0: i32) -> (i32, i32) {
    %c0_i32 = arith.constant 0 : i32
    %c0_i32_0 = arith.constant 0 : i32
    return %arg0, %c0_i32 : i32, i32
  }
  func.func @transform_1(%arg0: i32) -> (i32, i32) {
    %c0_i32 = arith.constant 0 : i32
    %c0_i32_0 = arith.constant 0 : i32
    return %arg0, %c0_i32 : i32, i32
  }
  func.func @transform_2(%arg0: i32) -> (i32, i32) {
    %c0_i32 = arith.constant 0 : i32
    %c0_i32_0 = arith.constant 0 : i32
    %c0_i32_1 = arith.constant 0 : i32
    return %c0_i32, %c0_i32_0 : i32, i32
  }
  func.func @transform_3(%arg0: i32) -> (i32, i32) {
    %c0_i32 = arith.constant 0 : i32
    %c0_i32_0 = arith.constant 0 : i32
    %c0_i32_1 = arith.constant 0 : i32
    return %c0_i32, %c0_i32_0 : i32, i32
  }
  func.func @transform_4(%arg0: i32) -> (i32, i32) {
    %c0_i32 = arith.constant 0 : i32
    %c0_i32_0 = arith.constant 0 : i32
    %c0_i32_1 = arith.constant 0 : i32
    return %c0_i32, %c0_i32_0 : i32, i32
  }
  func.func @transform_5(%arg0: i32) -> (i32, i32) {
    %c0_i32 = arith.constant 0 : i32
    %c0_i32_0 = arith.constant 0 : i32
    %c0_i32_1 = arith.constant 0 : i32
    return %c0_i32, %c0_i32_0 : i32, i32
  }
  func.func @transform_6(%arg0: i32) -> (i32, i32) {
    %c0_i32 = arith.constant 0 : i32
    %c0_i32_0 = arith.constant 0 : i32
    %c0_i32_1 = arith.constant 0 : i32
    return %c0_i32, %c0_i32_0 : i32, i32
  }
  func.func @transform_7(%arg0: i32) -> (i32, i32) {
    %c0_i32 = arith.constant 0 : i32
    %c0_i32_0 = arith.constant 0 : i32
    %c0_i32_1 = arith.constant 0 : i32
    return %c0_i32, %c0_i32_0 : i32, i32
  }
  func.func @transform_8(%arg0: i32) -> (i32, i32) {
    %c0_i32 = arith.constant 0 : i32
    %c0_i32_0 = arith.constant 0 : i32
    %c0_i32_1 = arith.constant 0 : i32
    return %c0_i32, %c0_i32_0 : i32, i32
  }
  func.func @transform_9(%arg0: i32) -> (i32, i32) {
    %c0_i32 = arith.constant 0 : i32
    %c0_i32_0 = arith.constant 0 : i32
    %c0_i32_1 = arith.constant 0 : i32
    return %c0_i32, %c0_i32_0 : i32, i32
  }
  func.func @transform_10(%arg0: i32) -> (i32, i32) {
    %c0_i32 = arith.constant 0 : i32
    %c0_i32_0 = arith.constant 0 : i32
    %c0_i32_1 = arith.constant 0 : i32
    return %c0_i32, %c0_i32_0 : i32, i32
  }
  func.func @transform_11(%arg0: i32) -> (i32, i32) {
    %c0_i32 = arith.constant 0 : i32
    %c0_i32_0 = arith.constant 0 : i32
    return %arg0, %c0_i32 : i32, i32
  }
}

</mosaic_0001>

<llo_original>
// kernel: mlp_qr_forward.1
$region0: #{mlp_qr_forward.1}
  #allocation0 [shape = 'u32[]', space=smem, size = 0x4, offset = 0x4, fixed_abs, tag = 'smem constant byte address 0x4 - core index']
  #allocation1 [shape = 'u32[144,128]{1,0:T(1,128)}', space=vmem, size = 0x12000, scoped, tag = 'internal scratch']
  %s0 = inlined_call_operand.vmem [shape: f32[8,6], index: 0, kind: input, shape index: {}]
  %s1 = inlined_call_operand.vmem [shape: s32[8,3], index: 1, kind: input, shape index: {}]
  %s2 = inlined_call_operand.vmem [shape: f32[6,4], index: 2, kind: input, shape index: {}]
  %s3 = inlined_call_operand.vmem [shape: f32[8,4], index: 3, kind: input, shape index: {}]
  %s4 = inlined_call_operand.vmem [shape: f32[4,4], index: 4, kind: input, shape index: {}]
  %s5 = inlined_call_operand.vmem [shape: f32[18,32], index: 5, kind: input, shape index: {}]
  %s6 = inlined_call_operand.vmem [shape: f32[1,32], index: 6, kind: input, shape index: {}]
  %s7 = inlined_call_operand.vmem [shape: f32[32,16], index: 7, kind: input, shape index: {}]
  %s8 = inlined_call_operand.vmem [shape: f32[1,16], index: 8, kind: input, shape index: {}]
  %s9 = inlined_call_operand.vmem [shape: f32[16,2], index: 9, kind: input, shape index: {}]
  %s10 = inlined_call_operand.vmem [shape: f32[1,2], index: 10, kind: input, shape index: {}]
  %s11 = inlined_call_operand.vmem [shape: f32[8,2], index: 11, kind: output, shape index: {}]
  %s12 = sld [smem:[#allocation0]]
  $region54: #{mlp_qr_forward.1} parent=0
    _
  %s14 = ssub.s32 1, %s12
  %s15 = scalar_select 0, %s14, %s12
  // Predicated region
  $region2: #{mlp_qr_forward.1} parent=0 // pred_check
    _
  $region3: #{mlp_qr_forward.1} parent=0 // pred_check_branch
    %17 = sbr.rel (0) target = $region5
  $region4: #{mlp_qr_forward.1} parent=0 // pred_region
    _
  $region5: #{mlp_qr_forward.1} parent=0 // pred_fallthru
    _
  // Predicated region
  $region6: #{mlp_qr_forward.1} parent=0 // pred_check
    _
  $region7: #{mlp_qr_forward.1} parent=0 // pred_check_branch
    %19 = sbr.rel (0) target = $region9
  $region8: #{mlp_qr_forward.1} parent=0 // pred_region
    _
  $region9: #{mlp_qr_forward.1} parent=0 // pred_fallthru
    _
  // Predicated region
  $region10: #{mlp_qr_forward.1} parent=0 // pred_check
    _
  $region11: #{mlp_qr_forward.1} parent=0 // pred_check_branch
    %21 = sbr.rel (0) target = $region13
  $region12: #{mlp_qr_forward.1} parent=0 // pred_region
    _
  $region13: #{mlp_qr_forward.1} parent=0 // pred_fallthru
    _
  // Predicated region
  $region14: #{mlp_qr_forward.1} parent=0 // pred_check
    _
  $region15: #{mlp_qr_forward.1} parent=0 // pred_check_branch
    %23 = sbr.rel (0) target = $region17
  $region16: #{mlp_qr_forward.1} parent=0 // pred_region
    _
  $region17: #{mlp_qr_forward.1} parent=0 // pred_fallthru
    _
  // Predicated region
  $region18: #{mlp_qr_forward.1} parent=0 // pred_check
    _
  $region19: #{mlp_qr_forward.1} parent=0 // pred_check_branch
    %25 = sbr.rel (0) target = $region21
  $region20: #{mlp_qr_forward.1} parent=0 // pred_region
    _
  $region21: #{mlp_qr_forward.1} parent=0 // pred_fallthru
    _
  // Predicated region
  $region22: #{mlp_qr_forward.1} parent=0 // pred_check
    _
  $region23: #{mlp_qr_forward.1} parent=0 // pred_check_branch
    %27 = sbr.rel (0) target = $region25
  $region24: #{mlp_qr_forward.1} parent=0 // pred_region
    _
  $region25: #{mlp_qr_forward.1} parent=0 // pred_fallthru
    _
  // Predicated region
  $region26: #{mlp_qr_forward.1} parent=0 // pred_check
    _
  $region27: #{mlp_qr_forward.1} parent=0 // pred_check_branch
    %29 = sbr.rel (0) target = $region29
  $region28: #{mlp_qr_forward.1} parent=0 // pred_region
    _
  $region29: #{mlp_qr_forward.1} parent=0 // pred_fallthru
    _
  // Predicated region
  $region30: #{mlp_qr_forward.1} parent=0 // pred_check
    _
  $region31: #{mlp_qr_forward.1} parent=0 // pred_check_branch
    %31 = sbr.rel (0) target = $region33
  $region32: #{mlp_qr_forward.1} parent=0 // pred_region
    _
  $region33: #{mlp_qr_forward.1} parent=0 // pred_fallthru
    _
  // Predicated region
  $region34: #{mlp_qr_forward.1} parent=0 // pred_check
    _
  $region35: #{mlp_qr_forward.1} parent=0 // pred_check_branch
    %33 = sbr.rel (0) target = $region37
  $region36: #{mlp_qr_forward.1} parent=0 // pred_region
    _
  $region37: #{mlp_qr_forward.1} parent=0 // pred_fallthru
    _
  // Predicated region
  $region38: #{mlp_qr_forward.1} parent=0 // pred_check
    _
  $region39: #{mlp_qr_forward.1} parent=0 // pred_check_branch
    %35 = sbr.rel (0) target = $region41
  $region40: #{mlp_qr_forward.1} parent=0 // pred_region
    _
  $region41: #{mlp_qr_forward.1} parent=0 // pred_fallthru
    _
  // Predicated region
  $region42: #{mlp_qr_forward.1} parent=0 // pred_check
    _
  $region43: #{mlp_qr_forward.1} parent=0 // pred_check_branch
    %37 = sbr.rel (0) target = $region45
  $region44: #{mlp_qr_forward.1} parent=0 // pred_region
    _
  $region45: #{mlp_qr_forward.1} parent=0 // pred_fallthru
    _
  %v38 = vld [vmem:[%s0] sm:$0xff]
  %v39 = vld [vmem:[%s1] sm:$0xff]
  %v40 = vld [vmem:[%s2] sm:$0x3f]
  %v41 = vlaneseq
  %v42 = vand.u32 %v41, 127
  %43 = vset.pattern.permute.xlu0 0
  %44 = vperm.xlu0 %43, %v39
  %v45 = vpop.permute.xlu0 %44
  %vm46 = vcmp.eq.s32.totalorder %v45, %v42
  %v47 = vsel %vm46, 1, 0
  %v48 = vcvt.s32.f32 %v47
  %vm49 = vcmask 48128
  %v51 = vsel %vm49, %v48, 0
  %vm53 = vcmask 1045504
  %v55 = vsel %vm53, %v40, 0
  %57 = vmatprep.subr.mxu0 0.0
  %58 = vmatpush1.msra.mxu0 %v55
  %59 = vmatprep.subr.mxu0 0.0
  %60 = vmatpush1.msra.mxu0 0.0
  %61 = vmatprep.subr.mxu0 0.0
  %62 = vmatpush1.msra.mxu0 0.0
  %63 = vmatprep.subr.mxu0 0.0
  %64 = vmatpush1.msra.mxu0 0.0
  %65 = vmatprep.subr.mxu0 0.0
  %66 = vmatpush1.msra.mxu0 0.0
  %67 = vmatprep.subr.mxu0 0.0
  %68 = vmatpush1.msra.mxu0 0.0
  %69 = vmatprep.subr.mxu0 0.0
  %70 = vmatpush1.msra.mxu0 0.0
  %71 = vmatprep.subr.mxu0 0.0
  %72 = vmatpush1.msra.mxu0 0.0
  %73 = vmatprep.subr.mxu0 0.0
  %74 = vmatpush1.msra.mxu0 0.0
  %75 = vmatprep.subr.mxu0 0.0
  %76 = vmatpush1.msra.mxu0 0.0
  %77 = vmatprep.subr.mxu0 0.0
  %78 = vmatpush1.msra.mxu0 0.0
  %79 = vmatprep.subr.mxu0 0.0
  %80 = vmatpush1.msra.mxu0 0.0
  %81 = vmatprep.subr.mxu0 0.0
  %82 = vmatpush1.msra.mxu0 0.0
  %83 = vmatprep.subr.mxu0 0.0
  %84 = vmatpush1.msra.mxu0 0.0
  %85 = vmatprep.subr.mxu0 0.0
  %86 = vmatpush1.msra.mxu0 0.0
  %87 = vmatprep.subr.mxu0 0.0
  %88 = vmatpush1.msra.mxu0 0.0
  %89 = vmatprep.subr.mxu0 0.0
  %90 = vmatpush1.msra.mxu0 0.0
  %91 = vmatprep.subr.mxu0 0.0
  %92 = vmatpush1.msra.mxu0 0.0
  %93 = vmatprep.subr.mxu0 0.0
  %94 = vmatpush1.msra.mxu0 0.0
  %95 = vmatprep.subr.mxu0 0.0
  %96 = vmatpush1.msra.mxu0 0.0
  %97 = vmatprep.subr.mxu0 0.0
  %98 = vmatpush1.msra.mxu0 0.0
  %99 = vmatprep.subr.mxu0 0.0
  %100 = vmatpush1.msra.mxu0 0.0
  %101 = vmatprep.subr.mxu0 0.0
  %102 = vmatpush1.msra.mxu0 0.0
  %103 = vmatprep.subr.mxu0 0.0
  %104 = vmatpush1.msra.mxu0 0.0
  %105 = vmatprep.subr.mxu0 0.0
  %106 = vmatpush1.msra.mxu0 0.0
  %107 = vmatprep.subr.mxu0 0.0
  %108 = vmatpush1.msra.mxu0 0.0
  %109 = vmatprep.subr.mxu0 0.0
  %110 = vmatpush1.msra.mxu0 0.0
  %111 = vmatprep.subr.mxu0 0.0
  %112 = vmatpush1.msra.mxu0 0.0
  %113 = vmatprep.subr.mxu0 0.0
  %114 = vmatpush1.msra.mxu0 0.0
  %115 = vmatprep.subr.mxu0 0.0
  %116 = vmatpush1.msra.mxu0 0.0
  %117 = vmatprep.subr.mxu0 0.0
  %118 = vmatpush1.msra.mxu0 0.0
  %119 = vmatprep.subr.mxu0 0.0
  %120 = vmatpush1.msra.mxu0 0.0
  %121 = vmatprep.mubr.f32.mxu0 0.0
  %122 = vmatmul.mubr.f32.gmra.mrb[0].mxu0 %v51
  %v123 = vpop.f32.mrb[0].mxu0
  %v124 = vadd.f32 0.0, %v123
  %v125 = vpop.f32.mrb[0].mxu0
  %126 = vdwg.mxu0
  %v127 = vld [vmem:[%s3] sm:$0xff]
  %128 = vset.pattern.permute.xlu0 1
  %129 = vperm.xlu0 %128, %v39
  %v130 = vpop.permute.xlu0 %129
  %vm131 = vcmp.eq.s32.totalorder %v130, %v42
  %v132 = vsel %vm131, 1, 0
  %v133 = vcvt.s32.f32 %v132
  %vm134 = vcmask 64512
  %v136 = vsel %vm134, %v133, 0
  %138 = vmatprep.subr.mxu0 0.0
  %139 = vmatpush1.msra.mxu0 %v127
  %140 = vmatprep.subr.mxu0 0.0
  %141 = vmatpush1.msra.mxu0 0.0
  %142 = vmatprep.subr.mxu0 0.0
  %143 = vmatpush1.msra.mxu0 0.0
  %144 = vmatprep.subr.mxu0 0.0
  %145 = vmatpush1.msra.mxu0 0.0
  %146 = vmatprep.subr.mxu0 0.0
  %147 = vmatpush1.msra.mxu0 0.0
  %148 = vmatprep.subr.mxu0 0.0
  %149 = vmatpush1.msra.mxu0 0.0
  %150 = vmatprep.subr.mxu0 0.0
  %151 = vmatpush1.msra.mxu0 0.0
  %152 = vmatprep.subr.mxu0 0.0
  %153 = vmatpush1.msra.mxu0 0.0
  %154 = vmatprep.subr.mxu0 0.0
  %155 = vmatpush1.msra.mxu0 0.0
  %156 = vmatprep.subr.mxu0 0.0
  %157 = vmatpush1.msra.mxu0 0.0
  %158 = vmatprep.subr.mxu0 0.0
  %159 = vmatpush1.msra.mxu0 0.0
  %160 = vmatprep.subr.mxu0 0.0
  %161 = vmatpush1.msra.mxu0 0.0
  %162 = vmatprep.subr.mxu0 0.0
  %163 = vmatpush1.msra.mxu0 0.0
  %164 = vmatprep.subr.mxu0 0.0
  %165 = vmatpush1.msra.mxu0 0.0
  %166 = vmatprep.subr.mxu0 0.0
  %167 = vmatpush1.msra.mxu0 0.0
  %168 = vmatprep.subr.mxu0 0.0
  %169 = vmatpush1.msra.mxu0 0.0
  %170 = vmatprep.subr.mxu0 0.0
  %171 = vmatpush1.msra.mxu0 0.0
  %172 = vmatprep.subr.mxu0 0.0
  %173 = vmatpush1.msra.mxu0 0.0
  %174 = vmatprep.subr.mxu0 0.0
  %175 = vmatpush1.msra.mxu0 0.0
  %176 = vmatprep.subr.mxu0 0.0
  %177 = vmatpush1.msra.mxu0 0.0
  %178 = vmatprep.subr.mxu0 0.0
  %179 = vmatpush1.msra.mxu0 0.0
  %180 = vmatprep.subr.mxu0 0.0
  %181 = vmatpush1.msra.mxu0 0.0
  %182 = vmatprep.subr.mxu0 0.0
  %183 = vmatpush1.msra.mxu0 0.0
  %184 = vmatprep.subr.mxu0 0.0
  %185 = vmatpush1.msra.mxu0 0.0
  %186 = vmatprep.subr.mxu0 0.0
  %187 = vmatpush1.msra.mxu0 0.0
  %188 = vmatprep.subr.mxu0 0.0
  %189 = vmatpush1.msra.mxu0 0.0
  %190 = vmatprep.subr.mxu0 0.0
  %191 = vmatpush1.msra.mxu0 0.0
  %192 = vmatprep.subr.mxu0 0.0
  %193 = vmatpush1.msra.mxu0 0.0
  %194 = vmatprep.subr.mxu0 0.0
  %195 = vmatpush1.msra.mxu0 0.0
  %196 = vmatprep.subr.mxu0 0.0
  %197 = vmatpush1.msra.mxu0 0.0
  %198 = vmatprep.subr.mxu0 0.0
  %199 = vmatpush1.msra.mxu0 0.0
  %200 = vmatprep.subr.mxu0 0.0
  %201 = vmatpush1.msra.mxu0 0.0
  %202 = vmatprep.mubr.f32.mxu0 0.0
  %203 = vmatmul.mubr.f32.gmra.mrb[0].mxu0 %v136
  %v204 = vpop.f32.mrb[0].mxu0
  %v205 = vadd.f32 0.0, %v204
  %v206 = vpop.f32.mrb[0].mxu0
  %207 = vdwg.mxu0
  %v208 = vld [vmem:[%s4] sm:$0xf]
  %209 = vset.pattern.permute.xlu0 2
  %210 = vperm.xlu0 %209, %v39
  %v211 = vpop.permute.xlu0 %210
  %vm212 = vcmp.eq.s32.totalorder %v211, %v42
  %v213 = vsel %vm212, 1, 0
  %v214 = vcvt.s32.f32 %v213
  %vm215 = vcmask 31744
  %v217 = vsel %vm215, %v214, 0
  %vm219 = vcmask 1043456
  %v221 = vsel %vm219, %v208, 0
  %223 = vmatprep.subr.mxu0 0.0
  %224 = vmatpush1.msra.mxu0 %v221
  %225 = vmatprep.subr.mxu0 0.0
  %226 = vmatpush1.msra.mxu0 0.0
  %227 = vmatprep.subr.mxu0 0.0
  %228 = vmatpush1.msra.mxu0 0.0
  %229 = vmatprep.subr.mxu0 0.0
  %230 = vmatpush1.msra.mxu0 0.0
  %231 = vmatprep.subr.mxu0 0.0
  %232 = vmatpush1.msra.mxu0 0.0
  %233 = vmatprep.subr.mxu0 0.0
  %234 = vmatpush1.msra.mxu0 0.0
  %235 = vmatprep.subr.mxu0 0.0
  %236 = vmatpush1.msra.mxu0 0.0
  %237 = vmatprep.subr.mxu0 0.0
  %238 = vmatpush1.msra.mxu0 0.0
  %239 = vmatprep.subr.mxu0 0.0
  %240 = vmatpush1.msra.mxu0 0.0
  %241 = vmatprep.subr.mxu0 0.0
  %242 = vmatpush1.msra.mxu0 0.0
  %243 = vmatprep.subr.mxu0 0.0
  %244 = vmatpush1.msra.mxu0 0.0
  %245 = vmatprep.subr.mxu0 0.0
  %246 = vmatpush1.msra.mxu0 0.0
  %247 = vmatprep.subr.mxu0 0.0
  %248 = vmatpush1.msra.mxu0 0.0
  %249 = vmatprep.subr.mxu0 0.0
  %250 = vmatpush1.msra.mxu0 0.0
  %251 = vmatprep.subr.mxu0 0.0
  %252 = vmatpush1.msra.mxu0 0.0
  %253 = vmatprep.subr.mxu0 0.0
  %254 = vmatpush1.msra.mxu0 0.0
  %255 = vmatprep.subr.mxu0 0.0
  %256 = vmatpush1.msra.mxu0 0.0
  %257 = vmatprep.subr.mxu0 0.0
  %258 = vmatpush1.msra.mxu0 0.0
  %259 = vmatprep.subr.mxu0 0.0
  %260 = vmatpush1.msra.mxu0 0.0
  %261 = vmatprep.subr.mxu0 0.0
  %262 = vmatpush1.msra.mxu0 0.0
  %263 = vmatprep.subr.mxu0 0.0
  %264 = vmatpush1.msra.mxu0 0.0
  %265 = vmatprep.subr.mxu0 0.0
  %266 = vmatpush1.msra.mxu0 0.0
  %267 = vmatprep.subr.mxu0 0.0
  %268 = vmatpush1.msra.mxu0 0.0
  %269 = vmatprep.subr.mxu0 0.0
  %270 = vmatpush1.msra.mxu0 0.0
  %271 = vmatprep.subr.mxu0 0.0
  %272 = vmatpush1.msra.mxu0 0.0
  %273 = vmatprep.subr.mxu0 0.0
  %274 = vmatpush1.msra.mxu0 0.0
  %275 = vmatprep.subr.mxu0 0.0
  %276 = vmatpush1.msra.mxu0 0.0
  %277 = vmatprep.subr.mxu0 0.0
  %278 = vmatpush1.msra.mxu0 0.0
  %279 = vmatprep.subr.mxu0 0.0
  %280 = vmatpush1.msra.mxu0 0.0
  %281 = vmatprep.subr.mxu0 0.0
  %282 = vmatpush1.msra.mxu0 0.0
  %283 = vmatprep.subr.mxu0 0.0
  %284 = vmatpush1.msra.mxu0 0.0
  %285 = vmatprep.subr.mxu0 0.0
  %286 = vmatpush1.msra.mxu0 0.0
  %287 = vmatprep.mubr.f32.mxu0 0.0
  %288 = vmatmul.mubr.f32.gmra.mrb[0].mxu0 %v217
  %v289 = vpop.f32.mrb[0].mxu0
  %v290 = vadd.f32 0.0, %v289
  %v291 = vpop.f32.mrb[0].mxu0
  %292 = vdwg.mxu0
  %294 = vrot.lane.b32.xlu0 %v124, 6
  %v295 = vpop.permute.xlu0 %294
  %298 = vrot.lane.b32.xlu0 %v205, 10
  %v299 = vpop.permute.xlu0 %298
  %302 = vrot.lane.b32.xlu0 %v290, 14
  %v303 = vpop.permute.xlu0 %302
  %v305 = vsel %vm49, %v38, %v295
  %vm306 = vcmask 80896
  %v307 = vsel %vm306, %v305, %v299
  %vm308 = vcmask 113664
  %v309 = vsel %vm308, %v307, %v303
  %v310 = vld [vmem:[%s5] sm:$0xff]
  %v311 = vld [vmem:[%s5 + $0x8] sm:$0xff]
  %v312 = vld [vmem:[%s5 + $0x10] sm:$0x3]
  %v313 = vld [vmem:[%s6] sm:$0x1]
  %v315 = vlaneseq
  %v316 = vshrl.u32 %v315, 7
  %v317 = vsub.s32 0, %v316
  %v318 = vrot.slane %v313, %v317
  %vm320 = vcmask 146432
  %v322 = vsel %vm320, %v309, 0
  %vm324 = vcmask 1041408
  %v326 = vsel %vm324, %v312, 0
  %328 = vmatprep.subr.mxu0 0.0
  %329 = vmatpush1.msra.mxu0 %v310
  %330 = vmatprep.subr.mxu0 0.0
  %331 = vmatpush1.msra.mxu0 %v311
  %332 = vmatprep.subr.mxu0 0.0
  %333 = vmatpush1.msra.mxu0 %v326
  %334 = vmatprep.subr.mxu0 0.0
  %335 = vmatpush1.msra.mxu0 0.0
  %336 = vmatprep.subr.mxu0 0.0
  %337 = vmatpush1.msra.mxu0 0.0
  %338 = vmatprep.subr.mxu0 0.0
  %339 = vmatpush1.msra.mxu0 0.0
  %340 = vmatprep.subr.mxu0 0.0
  %341 = vmatpush1.msra.mxu0 0.0
  %342 = vmatprep.subr.mxu0 0.0
  %343 = vmatpush1.msra.mxu0 0.0
  %344 = vmatprep.subr.mxu0 0.0
  %345 = vmatpush1.msra.mxu0 0.0
  %346 = vmatprep.subr.mxu0 0.0
  %347 = vmatpush1.msra.mxu0 0.0
  %348 = vmatprep.subr.mxu0 0.0
  %349 = vmatpush1.msra.mxu0 0.0
  %350 = vmatprep.subr.mxu0 0.0
  %351 = vmatpush1.msra.mxu0 0.0
  %352 = vmatprep.subr.mxu0 0.0
  %353 = vmatpush1.msra.mxu0 0.0
  %354 = vmatprep.subr.mxu0 0.0
  %355 = vmatpush1.msra.mxu0 0.0
  %356 = vmatprep.subr.mxu0 0.0
  %357 = vmatpush1.msra.mxu0 0.0
  %358 = vmatprep.subr.mxu0 0.0
  %359 = vmatpush1.msra.mxu0 0.0
  %360 = vmatprep.subr.mxu0 0.0
  %361 = vmatpush1.msra.mxu0 0.0
  %362 = vmatprep.subr.mxu0 0.0
  %363 = vmatpush1.msra.mxu0 0.0
  %364 = vmatprep.subr.mxu0 0.0
  %365 = vmatpush1.msra.mxu0 0.0
  %366 = vmatprep.subr.mxu0 0.0
  %367 = vmatpush1.msra.mxu0 0.0
  %368 = vmatprep.subr.mxu0 0.0
  %369 = vmatpush1.msra.mxu0 0.0
  %370 = vmatprep.subr.mxu0 0.0
  %371 = vmatpush1.msra.mxu0 0.0
  %372 = vmatprep.subr.mxu0 0.0
  %373 = vmatpush1.msra.mxu0 0.0
  %374 = vmatprep.subr.mxu0 0.0
  %375 = vmatpush1.msra.mxu0 0.0
  %376 = vmatprep.subr.mxu0 0.0
  %377 = vmatpush1.msra.mxu0 0.0
  %378 = vmatprep.subr.mxu0 0.0
  %379 = vmatpush1.msra.mxu0 0.0
  %380 = vmatprep.subr.mxu0 0.0
  %381 = vmatpush1.msra.mxu0 0.0
  %382 = vmatprep.subr.mxu0 0.0
  %383 = vmatpush1.msra.mxu0 0.0
  %384 = vmatprep.subr.mxu0 0.0
  %385 = vmatpush1.msra.mxu0 0.0
  %386 = vmatprep.subr.mxu0 0.0
  %387 = vmatpush1.msra.mxu0 0.0
  %388 = vmatprep.subr.mxu0 0.0
  %389 = vmatpush1.msra.mxu0 0.0
  %390 = vmatprep.subr.mxu0 0.0
  %391 = vmatpush1.msra.mxu0 0.0
  %392 = vmatprep.mubr.f32.mxu0 0.0
  %393 = vmatmul.mubr.f32.gmra.mrb[0].mxu0 %v322
  %v394 = vpop.f32.mrb[0].mxu0
  %v395 = vadd.f32 %v318, %v394
  %v396 = vpop.f32.mrb[0].mxu0
  %397 = vdwg.mxu0
  %v398 = vtanh.pop %v395
  %v399 = vld [vmem:[%s7] sm:$0xff]
  %v400 = vld [vmem:[%s7 + $0x8] sm:$0xff]
  %v401 = vld [vmem:[%s7 + $0x10] sm:$0xff]
  %v402 = vld [vmem:[%s7 + $0x18] sm:$0xff]
  %v403 = vld [vmem:[%s8] sm:$0x1]
  %v405 = vlaneseq
  %v406 = vshrl.u32 %v405, 7
  %v407 = vsub.s32 0, %v406
  %v408 = vrot.slane %v403, %v407
  %vm410 = vcmask 261120
  %v412 = vsel %vm410, %v398, 0
  %414 = vmatprep.subr.mxu0 0.0
  %415 = vmatpush1.msra.mxu0 %v399
  %416 = vmatprep.subr.mxu0 0.0
  %417 = vmatpush1.msra.mxu0 %v400
  %418 = vmatprep.subr.mxu0 0.0
  %419 = vmatpush1.msra.mxu0 %v401
  %420 = vmatprep.subr.mxu0 0.0
  %421 = vmatpush1.msra.mxu0 %v402
  %422 = vmatprep.subr.mxu0 0.0
  %423 = vmatpush1.msra.mxu0 0.0
  %424 = vmatprep.subr.mxu0 0.0
  %425 = vmatpush1.msra.mxu0 0.0
  %426 = vmatprep.subr.mxu0 0.0
  %427 = vmatpush1.msra.mxu0 0.0
  %428 = vmatprep.subr.mxu0 0.0
  %429 = vmatpush1.msra.mxu0 0.0
  %430 = vmatprep.subr.mxu0 0.0
  %431 = vmatpush1.msra.mxu0 0.0
  %432 = vmatprep.subr.mxu0 0.0
  %433 = vmatpush1.msra.mxu0 0.0
  %434 = vmatprep.subr.mxu0 0.0
  %435 = vmatpush1.msra.mxu0 0.0
  %436 = vmatprep.subr.mxu0 0.0
  %437 = vmatpush1.msra.mxu0 0.0
  %438 = vmatprep.subr.mxu0 0.0
  %439 = vmatpush1.msra.mxu0 0.0
  %440 = vmatprep.subr.mxu0 0.0
  %441 = vmatpush1.msra.mxu0 0.0
  %442 = vmatprep.subr.mxu0 0.0
  %443 = vmatpush1.msra.mxu0 0.0
  %444 = vmatprep.subr.mxu0 0.0
  %445 = vmatpush1.msra.mxu0 0.0
  %446 = vmatprep.subr.mxu0 0.0
  %447 = vmatpush1.msra.mxu0 0.0
  %448 = vmatprep.subr.mxu0 0.0
  %449 = vmatpush1.msra.mxu0 0.0
  %450 = vmatprep.subr.mxu0 0.0
  %451 = vmatpush1.msra.mxu0 0.0
  %452 = vmatprep.subr.mxu0 0.0
  %453 = vmatpush1.msra.mxu0 0.0
  %454 = vmatprep.subr.mxu0 0.0
  %455 = vmatpush1.msra.mxu0 0.0
  %456 = vmatprep.subr.mxu0 0.0
  %457 = vmatpush1.msra.mxu0 0.0
  %458 = vmatprep.subr.mxu0 0.0
  %459 = vmatpush1.msra.mxu0 0.0
  %460 = vmatprep.subr.mxu0 0.0
  %461 = vmatpush1.msra.mxu0 0.0
  %462 = vmatprep.subr.mxu0 0.0
  %463 = vmatpush1.msra.mxu0 0.0
  %464 = vmatprep.subr.mxu0 0.0
  %465 = vmatpush1.msra.mxu0 0.0
  %466 = vmatprep.subr.mxu0 0.0
  %467 = vmatpush1.msra.mxu0 0.0
  %468 = vmatprep.subr.mxu0 0.0
  %469 = vmatpush1.msra.mxu0 0.0
  %470 = vmatprep.subr.mxu0 0.0
  %471 = vmatpush1.msra.mxu0 0.0
  %472 = vmatprep.subr.mxu0 0.0
  %473 = vmatpush1.msra.mxu0 0.0
  %474 = vmatprep.subr.mxu0 0.0
  %475 = vmatpush1.msra.mxu0 0.0
  %476 = vmatprep.subr.mxu0 0.0
  %477 = vmatpush1.msra.mxu0 0.0
  %478 = vmatprep.mubr.f32.mxu0 0.0
  %479 = vmatmul.mubr.f32.gmra.mrb[0].mxu0 %v412
  %v480 = vpop.f32.mrb[0].mxu0
  %v481 = vadd.f32 %v408, %v480
  %v482 = vpop.f32.mrb[0].mxu0
  %483 = vdwg.mxu0
  %v484 = vmax.f32 %v481, 0.0
  %v485 = vld [vmem:[%s9] sm:$0xff]
  %v486 = vld [vmem:[%s9 + $0x8] sm:$0xff]
  %v487 = vld [vmem:[%s10] sm:$0x1]
  %v489 = vlaneseq
  %v490 = vshrl.u32 %v489, 7
  %v491 = vsub.s32 0, %v490
  %v492 = vrot.slane %v487, %v491
  %vm494 = vcmask 130048
  %v496 = vsel %vm494, %v484, 0
  %498 = vmatprep.subr.mxu0 0.0
  %499 = vmatpush1.msra.mxu0 %v485
  %500 = vmatprep.subr.mxu0 0.0
  %501 = vmatpush1.msra.mxu0 %v486
  %502 = vmatprep.subr.mxu0 0.0
  %503 = vmatpush1.msra.mxu0 0.0
  %504 = vmatprep.subr.mxu0 0.0
  %505 = vmatpush1.msra.mxu0 0.0
  %506 = vmatprep.subr.mxu0 0.0
  %507 = vmatpush1.msra.mxu0 0.0
  %508 = vmatprep.subr.mxu0 0.0
  %509 = vmatpush1.msra.mxu0 0.0
  %510 = vmatprep.subr.mxu0 0.0
  %511 = vmatpush1.msra.mxu0 0.0
  %512 = vmatprep.subr.mxu0 0.0
  %513 = vmatpush1.msra.mxu0 0.0
  %514 = vmatprep.subr.mxu0 0.0
  %515 = vmatpush1.msra.mxu0 0.0
  %516 = vmatprep.subr.mxu0 0.0
  %517 = vmatpush1.msra.mxu0 0.0
  %518 = vmatprep.subr.mxu0 0.0
  %519 = vmatpush1.msra.mxu0 0.0
  %520 = vmatprep.subr.mxu0 0.0
  %521 = vmatpush1.msra.mxu0 0.0
  %522 = vmatprep.subr.mxu0 0.0
  %523 = vmatpush1.msra.mxu0 0.0
  %524 = vmatprep.subr.mxu0 0.0
  %525 = vmatpush1.msra.mxu0 0.0
  %526 = vmatprep.subr.mxu0 0.0
  %527 = vmatpush1.msra.mxu0 0.0
  %528 = vmatprep.subr.mxu0 0.0
  %529 = vmatpush1.msra.mxu0 0.0
  %530 = vmatprep.subr.mxu0 0.0
  %531 = vmatpush1.msra.mxu0 0.0
  %532 = vmatprep.subr.mxu0 0.0
  %533 = vmatpush1.msra.mxu0 0.0
  %534 = vmatprep.subr.mxu0 0.0
  %535 = vmatpush1.msra.mxu0 0.0
  %536 = vmatprep.subr.mxu0 0.0
  %537 = vmatpush1.msra.mxu0 0.0
  %538 = vmatprep.subr.mxu0 0.0
  %539 = vmatpush1.msra.mxu0 0.0
  %540 = vmatprep.subr.mxu0 0.0
  %541 = vmatpush1.msra.mxu0 0.0
  %542 = vmatprep.subr.mxu0 0.0
  %543 = vmatpush1.msra.mxu0 0.0
  %544 = vmatprep.subr.mxu0 0.0
  %545 = vmatpush1.msra.mxu0 0.0
  %546 = vmatprep.subr.mxu0 0.0
  %547 = vmatpush1.msra.mxu0 0.0
  %548 = vmatprep.subr.mxu0 0.0
  %549 = vmatpush1.msra.mxu0 0.0
  %550 = vmatprep.subr.mxu0 0.0
  %551 = vmatpush1.msra.mxu0 0.0
  %552 = vmatprep.subr.mxu0 0.0
  %553 = vmatpush1.msra.mxu0 0.0
  %554 = vmatprep.subr.mxu0 0.0
  %555 = vmatpush1.msra.mxu0 0.0
  %556 = vmatprep.subr.mxu0 0.0
  %557 = vmatpush1.msra.mxu0 0.0
  %558 = vmatprep.subr.mxu0 0.0
  %559 = vmatpush1.msra.mxu0 0.0
  %560 = vmatprep.subr.mxu0 0.0
  %561 = vmatpush1.msra.mxu0 0.0
  %562 = vmatprep.mubr.f32.mxu0 0.0
  %563 = vmatmul.mubr.f32.gmra.mrb[0].mxu0 %v496
  %v564 = vpop.f32.mrb[0].mxu0
  %v565 = vadd.f32 %v492, %v564
  %v566 = vpop.f32.mrb[0].mxu0
  %567 = vdwg.mxu0
  %v568 = vmax.f32 %v565, 0.0
  %vm569 = vcmp.ne.f32.partialorder %v565, %v565
  %v570 = vadd.f32 %v565, 0.0
  %v571 = vand.u32 2147483647, %v565
  %v572 = vsub.f32 0.0, %v571
  %v573 = vmul.f32 %v572, 1.442695
  %v574 = vpow.pop %v573
  %v575 = vadd.f32 %v574, 1.0
  %v576 = vlog2.pop %v575
  %v577 = vmul.f32 %v576, 0.6931472
  %v578 = vmul.f32 -0.5, %v574
  %v579 = vadd.f32 %v578, 1.0
  %v580 = vmul.f32 %v579, %v574
  %v581 = vand.u32 2147483647, %v574
  %vm582 = vcmp.lt.f32.partialorder %v581, 0.0004427343
  %v583 = vsel %vm582, %v580, %v577
  %v584 = vadd.f32 %v568, %v583
  %v585 = vsel %vm569, %v570, %v584
  %vm586 = vcmask 15360
  %587 = vst.msk [vmem:[%s11] sm:$0xff] %vm586, %v585
  // Predicated region
  $region46: #{mlp_qr_forward.1} parent=0 // pred_check
    _
  $region47: #{mlp_qr_forward.1} parent=0 // pred_check_branch
    %589 = sbr.rel (0) target = $region49
  $region48: #{mlp_qr_forward.1} parent=0 // pred_region
    _
  $region49: #{mlp_qr_forward.1} parent=0 // pred_fallthru
    _
  // Predicated region
  $region50: #{mlp_qr_forward.1} parent=0 // pred_check
    _
  $region51: #{mlp_qr_forward.1} parent=0 // pred_check_branch
    %591 = sbr.rel (0) target = $region53
  $region52: #{mlp_qr_forward.1} parent=0 // pred_region
    _
  $region53: #{mlp_qr_forward.1} parent=0 // pred_fallthru
    _

</llo_original>
